<compile_context>
chip_gen: v7x
topology: tpu7x:2x2x1
jax: 0.10.0
libtpu: 0.0.40
codegen_flags: <defaults>
</compile_context>

<pallas_src>
import math

import jax
import jax.numpy as jnp
from jax import lax
from jax.experimental import pallas as pl
from jax.experimental.pallas import tpu as pltpu


def _round_up(x, m):
    return -(-x // m) * m


# ---------------------------------------------------------------------------
# pltpu.roll convention probe (cached): the stencil needs "shift left by dx".
# A one-off (8,128) roll determines the rotation convention on this backend so
# the column shifts are correct regardless of it.
# ---------------------------------------------------------------------------
_ROLL_IS_JNP_CONVENTION = None


def _roll_matches_jnp():
    global _ROLL_IS_JNP_CONVENTION
    if _ROLL_IS_JNP_CONVENTION is None:
        def probe(x_ref, o_ref):
            o_ref[...] = pltpu.roll(x_ref[...], 127, axis=1)

        x = jnp.broadcast_to(jnp.arange(128, dtype=jnp.float32), (8, 128))
        y = pl.pallas_call(
            probe, out_shape=jax.ShapeDtypeStruct((8, 128), jnp.float32))(x)
        # jnp.roll convention (out[j] = in[(j - shift) % n]) gives y[0,0] == 1.
        _ROLL_IS_JNP_CONVENTION = bool(y[0, 0] == 1.0)
    return _ROLL_IS_JNP_CONVENTION


# ---------------------------------------------------------------------------
# Pallas kernel: fused 3x3 same-padding conv (NCHW) + relu + pog epilogue.
# ---------------------------------------------------------------------------
def _make_conv_kernel(tl, wp, roll_is_jnp):
    m = tl * wp

    def left_shift(v, k):
        # want: result[j] = v[(j + k) mod m]
        s = (m - k) if roll_is_jnp else k
        return pltpu.roll(v, s, axis=1)

    def kernel(x_ref, w_ref, b_ref, sigma_ref, pog_ref):
        # x_ref:     (Cin, (TL+2)*Wp) bf16  zero-padded row band, rows flattened
        #            into the lane axis (each padded row = exactly Wp lanes).
        # w_ref:     (9, TCo, Cin)     bf16  packed weights, tap = dy*3 + dx.
        # b_ref:     (TCo, 1)          f32   bias.
        # sigma_ref: (TCo, TL*Wp)            relu(conv)
        # pog_ref:   (TCo, TL*Wp)            1 - exp(-sigma)
        full = x_ref[...]
        # Row (dy) taps are lane-ALIGNED slices (offsets multiples of Wp with
        # Wp % 128 == 0) of the flat band -> no relayout, no copies of note.
        taps = [full[:, dy * wp: dy * wp + m] for dy in range(3)]

        def column(dx):
            # Q_dx[co, j] = sum_{dy,ci} w[co,ci,dy,dx] * band[ci, j + dy*Wp]
            q = None
            for dy in range(3):
                part = jnp.dot(w_ref[dy * 3 + dx], taps[dy],
                               preferred_element_type=jnp.float32)
                q = part if q is None else q + part
            return q

        # out[j] = Q0[j] + Q1[j+1] + Q2[j+2]; the +dx column shift is a lane
        # roll of the f32 partials.  Wrap-around only lands in the zero-pad
        # columns (>= W), which are stripped host-side.
        # NOTE: K per MXU push is Cin; for tiny Cin one could group the three
        # dy taps (K = 3*Cin) at the cost of a sublane concat -- not worth it
        # for realistic channel counts.
        acc = column(0)
        acc = acc + left_shift(column(1), 1)
        acc = acc + left_shift(column(2), 2)
        acc = acc + b_ref[...]                       # (TCo, 1) broadcast

        sigma = jnp.maximum(acc, 0.0)                # F.relu(output)
        # pog = 1 - exp(-sigma); series expansion below 1e-3 gives expm1-level
        # precision without relying on an expm1 lowering rule.
        pog = jnp.where(sigma < 1e-3,
                        sigma * (1.0 - 0.5 * sigma),
                        1.0 - jnp.exp(-sigma))
        sigma_ref[...] = sigma.astype(sigma_ref.dtype)
        pog_ref[...] = pog.astype(pog_ref.dtype)

    return kernel


# ---------------------------------------------------------------------------
# Host-side tiling / budgets
# ---------------------------------------------------------------------------
def _est_vmem_bytes(tl, tco, cin, wp, out_isize):
    """Conservative per-step VMEM footprint incl. (8,128) layout padding."""
    c8 = _round_up(cin, 8)
    t8 = _round_up(tco, 8)
    mm = tl * wp
    band = c8 * (tl + 2) * wp * 2          # bf16 band
    taps = 3 * c8 * mm * 2                 # worst case: tap slices materialize
    accs = 3 * t8 * mm * 4                 # acc + column partial + rolled temp
    outs = 2 * 2 * t8 * mm * out_isize     # two outputs, double-buffered
    wts = 2 * 9 * t8 * max(cin, 128) * 2   # double-buffered packed weights
    return 2 * band + taps + accs + outs + wts + (1 << 20)


def _choose_cout_tile(cout, max_cout):
    if cout <= max_cout:
        return cout
    for tc in range(max_cout, 7, -1):
        if cout % tc == 0 and tc % 8 == 0:
            return tc
    return cout


def _choose_row_tile(length, fits):
    # With the lane dim padded to Wp (multiple of 128) every divisor of L is
    # layout-legal, so just take the largest one inside the VMEM budget.
    for tl in range(length, 0, -1):
        if length % tl == 0 and fits(tl):
            return tl
    return 1


def conv3x3_relu_pog(x_nchw, w_oihw, bias, *, out_dtype=jnp.float32):
    """3x3 'same' conv (PyTorch OIHW weights) fused with relu + pog.

    x_nchw: (N, Cin, L, W).  Returns (sigma, pog), each (N, Cout, L, W).
    out_dtype=jnp.bfloat16 halves store traffic if the consumer allows it.
    """
    N, Cin, L, W = x_nchw.shape
    Cout = w_oihw.shape[0]
    Wp = _round_up(W + 2, 128)             # lane-dense width incl. 1+1 halo
    out_isize = jnp.dtype(out_dtype).itemsize

    # ---- generation-aware budgets ------------------------------------------
    try:
        vmem_cap = int(getattr(pltpu.get_tpu_info(), "vmem_capacity_bytes",
                               64 << 20))
    except Exception:
        vmem_cap = 64 << 20                # conservative (v7x-sized) fallback
    vmem_budget = max(min((vmem_cap * 3) // 4, vmem_cap - (8 << 20)), 16 << 20)
    try:
        kind = jax.devices()[0].device_kind.lower()
    except Exception:
        kind = ""
    max_tco = 128 if "v5" in kind else 256     # v5e MXU is 128x128

    TCo = _choose_cout_tile(Cout, max_tco)
    TL = _choose_row_tile(
        L, lambda tl: _est_vmem_bytes(tl, TCo, Cin, Wp, out_isize) <= vmem_budget)
    n_rt = L // TL
    n_co = Cout // TCo
    band_len = (TL + 2) * Wp
    M = TL * Wp

    # ---- operands ------------------------------------------------------------
    # Occupancy is {0,1} -> bf16 activations are lossless; bf16 weights run the
    # MXU at native rate (accumulation stays f32).
    xb = x_nchw.astype(jnp.bfloat16)
    x_pad = jnp.pad(xb, ((0, 0), (0, 0), (1, 1), (1, Wp - W - 1)))
    if n_rt == 1:
        x_bands = x_pad.reshape(N, 1, Cin, band_len)   # pure reshape, no copy
    else:
        # TODO(synk): for very large L a manual-DMA halo pipeline
        # (memory_space=pl.ANY + pltpu.make_async_copy) would avoid
        # materializing the overlapping bands; the overlap here is only 2/TL.
        x_bands = jnp.stack(
            [x_pad[:, :, b * TL:b * TL + TL + 2, :] for b in range(n_rt)],
            axis=1).reshape(N, n_rt, Cin, band_len)

    # Packed weights (9, Cout, Cin), tap = dy*3 + dx.  Leading-axis indexing in
    # the kernel is a free offset (no lane-misaligned weight slices).
    w_pack = jnp.transpose(w_oihw.astype(jnp.bfloat16), (2, 3, 0, 1)).reshape(
        9, Cout, Cin)
    b_col = bias.astype(jnp.float32).reshape(Cout, 1)

    # ---- grid ordering: reuse the larger operand between consecutive steps ---
    weight_bytes = 9 * Cout * Cin * 2
    input_bytes = N * Cin * (L + 2) * Wp * 2
    co_innermost = not (n_co > 1 and
                        (n_co - 1) * input_bytes < (N * n_rt - 1) * weight_bytes)
    if co_innermost:     # band block index constant across co -> band reused
        grid = (N, n_rt, n_co)
        x_map = lambda n, li, co: (n, li, 0, 0)
        w_map = lambda n, li, co: (0, co, 0)
        b_map = lambda n, li, co: (co, 0)
        o_map = lambda n, li, co: (n, co, li)
    else:                # weights reused across row bands
        grid = (N, n_co, n_rt)
        x_map = lambda n, co, li: (n, li, 0, 0)
        w_map = lambda n, co, li: (0, co, 0)
        b_map = lambda n, co, li: (co, 0)
        o_map = lambda n, co, li: (n, co, li)

    out_sds = jax.ShapeDtypeStruct((N, Cout, L * Wp), out_dtype)
    out_spec = pl.BlockSpec((None, TCo, M), o_map)

    est = _est_vmem_bytes(TL, TCo, Cin, Wp, out_isize)
    vmem_limit = int(max(32 << 20, min(max(vmem_budget, int(1.2 * est)),
                                       vmem_cap - (4 << 20))))

    sigma_flat, pog_flat = pl.pallas_call(
        _make_conv_kernel(TL, Wp, _roll_matches_jnp()),
        out_shape=(out_sds, out_sds),
        grid_spec=pltpu.PrefetchScalarGridSpec(
            num_scalar_prefetch=0,
            grid=grid,
            in_specs=[
                pl.BlockSpec((None, None, Cin, band_len), x_map),
                pl.BlockSpec((9, TCo, Cin), w_map),
                pl.BlockSpec((TCo, 1), b_map),
            ],
            out_specs=[out_spec, out_spec],
        ),
        compiler_params=pltpu.CompilerParams(
            dimension_semantics=("parallel", "parallel", "parallel"),
            vmem_limit_bytes=vmem_limit),
    )(x_bands, w_pack, b_col)

    # (N, Cout, L*Wp) -> (N, Cout, L, Wp) is a free row-major split; the
    # [..., :W] strip only costs anything when W + 2 is not already 128-aligned.
    sigma = sigma_flat.reshape(N, Cout, L, Wp)[..., :W]
    pog = pog_flat.reshape(N, Cout, L, Wp)[..., :W]
    return sigma, pog


# ---------------------------------------------------------------------------
# Model wrapper (parameter setup + glue in plain JAX)
# ---------------------------------------------------------------------------
class OriModelPallas:
    def __init__(self, batch_size, n_input, n_output, pc_range, voxel_size, key):
        self.batch_size = batch_size
        self.input_T = n_input
        self.output_T = n_output
        self.pc_range = pc_range
        self.voxel_size = voxel_size
        self.n_height = int((pc_range[5] - pc_range[2]) / voxel_size)
        self.n_length = int((pc_range[4] - pc_range[1]) / voxel_size)
        self.n_width = int((pc_range[3] - pc_range[0]) / voxel_size)
        self.input_grid = [self.input_T, self.n_height, self.n_length, self.n_width]
        self.output_grid = [self.output_T, self.n_height, self.n_length, self.n_width]

        self.offset = jnp.asarray(pc_range[:3], jnp.float32)[None, None, :]
        self.scaler = jnp.asarray([voxel_size] * 3, jnp.float32)[None, None, :]

        in_ch = self.input_T * self.n_height
        out_ch = self.output_T * self.n_height
        # Deterministic PyTorch-like init for self.linear = Conv2d(in, out, 3, pad=1)
        kw, kb = jax.random.split(key)
        bound = 1.0 / math.sqrt(in_ch * 9)
        self.lin_w = jax.random.uniform(kw, (out_ch, in_ch, 3, 3), jnp.float32,
                                        -bound, bound)
        self.lin_b = jax.random.uniform(kb, (out_ch,), jnp.float32, -bound, bound)
        # TODO(synk): DenseEncoder/DenseDecoder class definitions are not provided
        # in the reference source, so only the `self.linear` conv branch is built.

    def _voxelize(self, points_vox, tindex):
        """dvr.init equivalent: binary occupancy grid (N, T, H, L, W)."""
        T, H, L, W = self.input_grid
        N, P, _ = points_vox.shape
        ix = jnp.floor(points_vox[..., 0]).astype(jnp.int32)   # -> W (x)
        iy = jnp.floor(points_vox[..., 1]).astype(jnp.int32)   # -> L (y)
        iz = jnp.floor(points_vox[..., 2]).astype(jnp.int32)   # -> H (z)
        it = tindex.astype(jnp.int32)
        valid = ((ix >= 0) & (ix < W) & (iy >= 0) & (iy < L) &
                 (iz >= 0) & (iz < H) & (it >= 0) & (it < T))
        ix = jnp.clip(ix, 0, W - 1)
        iy = jnp.clip(iy, 0, L - 1)
        iz = jnp.clip(iz, 0, H - 1)
        it = jnp.clip(it, 0, T - 1)
        nn = jnp.broadcast_to(jnp.arange(N)[:, None], (N, P))
        occ = jnp.zeros((N, T, H, L, W), jnp.float32)
        # TODO(synk): exact dvr.init semantics approximated as a binary scatter-max.
        return occ.at[nn, it, iz, iy, ix].max(valid.astype(jnp.float32))

    def _build_input(self, input_points, input_tindex):
        pts = ((input_points - self.offset) / self.scaler).astype(jnp.float32)
        occ = self._voxelize(pts, input_tindex)
        N = occ.shape[0]
        return occ.reshape(N, self.input_T * self.n_height,
                           self.n_length, self.n_width)

    def forward(self, input_points, input_tindex, output_origin, output_points,
                output_tindex):
        output_origin = ((output_origin - self.offset) / self.scaler).astype(jnp.float32)
        output_points = ((output_points - self.offset) / self.scaler).astype(jnp.float32)

        _input = self._build_input(input_points, input_tindex)   # (N, Cin, L, W)
        N = _input.shape[0]

        # Hot path in Pallas: self.linear (3x3 conv) fused with relu + pog.
        # The pre-activation conv output never survives F.relu(..., inplace=True)
        # in the reference eval path, so only sigma / pog are written to HBM.
        sigma_nchw, pog_nchw = conv3x3_relu_pog(_input, self.lin_w, self.lin_b)

        shape5 = (N, self.output_T, self.n_height, self.n_length, self.n_width)
        sigma = sigma_nchw.reshape(shape5)
        pog = pog_nchw.reshape(shape5)

        # TODO(synk): dvr.render / dvr.render_forward is a data-dependent CUDA ray
        # marcher (and the chamfer/pcd metrics are host-side numpy loops) with no
        # clean Pallas equivalent; the distance losses are not reproduced.
        return {"sigma": sigma, "pog": pog,
                "output_origin_vox": output_origin,
                "output_points_vox": output_points}


if __name__ == "__main__":
    key = jax.random.PRNGKey(0)
    k_model, k_ip, k_it, k_oo, k_op, k_ot = jax.random.split(key, 6)

    # Small, consistent config: voxel_size=1, pc_range -> H=4, L=16, W=16.
    N = 2
    T_in, T_out = 2, 2
    P = 64
    pc_range = [-8.0, -8.0, -2.0, 8.0, 8.0, 2.0]
    voxel_size = 1.0

    model = OriModelPallas(batch_size=N, n_input=T_in, n_output=T_out,
                           pc_range=pc_range, voxel_size=voxel_size, key=k_model)

    lo = jnp.asarray(pc_range[:3], jnp.float32)
    hi = jnp.asarray(pc_range[3:], jnp.float32)
    input_points = jax.random.uniform(k_ip, (N, P, 3), jnp.float32) * (hi - lo) + lo
    input_tindex = jax.random.randint(k_it, (N, P), 0, T_in)
    output_origin = jax.random.uniform(k_oo, (N, T_out, 3), jnp.float32) * (hi - lo) + lo
    output_points = jax.random.uniform(k_op, (N, P, 3), jnp.float32) * (hi - lo) + lo
    output_tindex = jax.random.randint(k_ot, (N, P), 0, T_out)

    ret = model.forward(input_points, input_tindex, output_origin,
                        output_points, output_tindex)
    ret = jax.block_until_ready(ret)

    H, L, W = model.n_height, model.n_length, model.n_width
    assert ret["sigma"].shape == (N, T_out, H, L, W)
    assert ret["pog"].shape == (N, T_out, H, L, W)
    assert bool(jnp.all(jnp.isfinite(ret["sigma"])))
    assert bool(jnp.all(ret["sigma"] >= 0.0))
    assert bool(jnp.all((ret["pog"] >= 0.0) & (ret["pog"] <= 1.0)))

    # Pure-JAX reference for the fused conv + relu + pog path (f32 conv;
    # the kernel uses bf16 weights, hence the loose tolerance).
    x_in = model._build_input(input_points, input_tindex)
    ref = lax.conv_general_dilated(
        x_in, model.lin_w, window_strides=(1, 1), padding=((1, 1), (1, 1)),
        dimension_numbers=("NCHW", "OIHW", "NCHW"))
    ref = ref + model.lin_b[None, :, None, None]
    ref_sigma = jnp.maximum(ref, 0.0)
    ref_pog = 1.0 - jnp.exp(-ref_sigma)
    got_sigma = ret["sigma"].reshape(N, -1, L, W)
    got_pog = ret["pog"].reshape(N, -1, L, W)
    err_sigma = float(jnp.max(jnp.abs(got_sigma - ref_sigma)))
    err_pog = float(jnp.max(jnp.abs(got_pog - ref_pog)))
    assert err_sigma < 3e-2, f"sigma mismatch vs reference conv: {err_sigma}"
    assert err_pog < 3e-2, f"pog mismatch vs reference conv: {err_pog}"

    print("KERNEL_OK")
</pallas_src>

<mosaic_0001>
module attributes {stable_mosaic.version = 11 : i64} {
  func.func @probe(%arg0: memref<8x128xf32, #tpu.memory_space<vmem>>, %arg1: memref<8x128xf32, #tpu.memory_space<vmem>>) attributes {dimension_semantics = [], scalar_prefetch = 0 : i64, scratch_operands = 0 : i64, tpu.core_type = #tpu.core_type<tc>} {
    %c0 = arith.constant 0 : index
    %c0_0 = arith.constant 0 : index
    %0 = vector.load %arg0[%c0, %c0_0] : memref<8x128xf32, #tpu.memory_space<vmem>>, vector<8x128xf32>
    %c127_i32 = arith.constant 127 : i32
    %1 = tpu.dynamic_rotate %0 by %c127_i32 dim 1 : vector<8x128xf32>, i32 -> vector<8x128xf32>
    %c0_1 = arith.constant 0 : index
    %c0_2 = arith.constant 0 : index
    %2 = vector.load %arg1[%c0_1, %c0_2] : memref<8x128xf32, #tpu.memory_space<vmem>>, vector<8x128xf32>
    tpu.vector_store %arg1[%c0_1, %c0_2], %1 {strides = array<i32>} : memref<8x128xf32, #tpu.memory_space<vmem>>, vector<8x128xf32>,
    return
  }
}

</mosaic_0001>

<llo_original>
// kernel: tpu_custom_call.1
$region0: #{tpu_custom_call.1}
  #allocation0 [shape = 'u32[]', space=smem, size = 0x4, offset = 0x4, fixed_abs, tag = 'smem constant byte address 0x4 - core index']
  #allocation1 [shape = 'u32[144,128]{1,0:T(1,128)}', space=vmem, size = 0x12000, scoped, tag = 'internal scratch']
  %s0 = inlined_call_operand.hbm [shape: f32[8,128], index: 0, kind: input, shape index: {}]
  %s1 = inlined_call_operand.hbm [shape: f32[8,128], index: 1, kind: output, shape index: {}]
  %s2 = sld [smem:[#allocation0]]
  $region18: #{tpu_custom_call.1} parent=0
    _
  %s4 = ssub.s32 1, %s2
  %s5 = scalar_select 0, %s4, %s2
  $region1: #{tpu_custom_call.1} parent=0
    #allocation2 [shape = 'u8[4096]{0}', space=vmem, size = 0x1000, scoped, tag = 'input window, operand 0, single buffered']
    #allocation3 [shape = 's32[1]{0}', space=sflag, size = 0x4, scoped, tag = 'scoped memory for tpu_custom_call.1']
    #allocation4 [shape = 's32[1]{0}', space=sflag, size = 0x4, scoped, tag = 'scoped memory for tpu_custom_call.1']
    #allocation5 [shape = 'u8[4096]{0}', space=vmem, size = 0x1000, scoped, tag = 'output window, operand 0, single buffered']
    %6 = vsyncpa [#allocation3], 0
    %7 = vsyncpa [#allocation4], 0
    // Predicated region
    $region2: #{tpu_custom_call.1} parent=1 // pred_check
      _
    $region3: #{tpu_custom_call.1} parent=1 // pred_check_branch
      %9 = sbr.rel (0) target = $region5
    $region4: #{tpu_custom_call.1} parent=1 // pred_region
      %s11 = ssub.s32 128, 128
      %12 = vsyncadd [#allocation3], %s11
      %s14 = sshll.u32 [#allocation2], 4
      %s15 = int_to_ptr.vmem [resolvable:$true] %s14
      %17 = dma.hbm_to_vmem [thread:$0]  %s0, 128, %s15, [#allocation3]
    $region5: #{tpu_custom_call.1} parent=1 // pred_fallthru
      _
    // Predicated region
    $region6: #{tpu_custom_call.1} parent=1 // pred_check
      _
    $region7: #{tpu_custom_call.1} parent=1 // pred_check_branch
      %19 = sbr.rel (0) target = $region9
    $region8: #{tpu_custom_call.1} parent=1 // pred_region
      %20 = dma.done [#allocation3], 128
    $region9: #{tpu_custom_call.1} parent=1 // pred_fallthru
      _
    %v21 = vld [vmem:[#allocation2] sm:$0xff]
    %22 = vrot.lane.b32.xlu0 %v21, 127
    %v23 = vpop.permute.xlu0 %22
    %24 = vst [vmem:[#allocation5] sm:$0xff] %v23
    // Predicated region
    $region10: #{tpu_custom_call.1} parent=1 // pred_check
      _
    $region11: #{tpu_custom_call.1} parent=1 // pred_check_branch
      %26 = sbr.rel (0) target = $region13
    $region12: #{tpu_custom_call.1} parent=1 // pred_region
      %s28 = ssub.s32 128, 128
      %29 = vsyncadd [#allocation4], %s28
      %s31 = sshll.u32 [#allocation5], 4
      %s32 = int_to_ptr.vmem [resolvable:$true] %s31
      %34 = dma.vmem_to_hbm [thread:$0]  %s32, 128, %s1, [#allocation4]
    $region13: #{tpu_custom_call.1} parent=1 // pred_fallthru
      _
    // Predicated region
    $region14: #{tpu_custom_call.1} parent=1 // pred_check
      _
    $region15: #{tpu_custom_call.1} parent=1 // pred_check_branch
      %36 = sbr.rel (0) target = $region17
    $region16: #{tpu_custom_call.1} parent=1 // pred_region
      %37 = dma.done [#allocation4], 128
    $region17: #{tpu_custom_call.1} parent=1 // pred_fallthru
      _
    %38 = vsyncpa [#allocation3], 1
    %39 = vsyncpa [#allocation4], 1

</llo_original>
